<compile_context>
chip_gen: v6e
topology: v6e:2x2x1
jax: 0.10.0
libtpu: 0.0.40
codegen_flags: <defaults>
</compile_context>

<pallas_src>
import functools

import jax
import jax.numpy as jnp
from jax.experimental import pallas as pl
from jax.experimental.pallas import tpu as pltpu


def _hyperprior_lstm_kernel(x_ref, g_ref, w_ref, scal_ref, step_ref, out_ref, *, z_dim):
    Z = z_dim

    # mean(dim=0).mean(dim=0) and grad[0].mean(dim=0): the 1/(S*B) and 1/B scales are
    # already folded into the weight slab, so plain row-sums suffice here.
    sum_x = jnp.sum(x_ref[...], axis=0, keepdims=True)      # (1, Z)
    sum_g = jnp.sum(g_ref[...], axis=0, keepdims=True)      # (1, Z)

    # Packed weight slab (8, Z+1):
    #   rows 0..3, cols 0..Z-1 : W_ih[:, :Z] / (S*B)
    #   rows 4..7, cols 0..Z-1 : W_ih[:, Z:] / B
    #   rows 0..3, col  Z      : W_hh (hidden_dim == 1)
    #   rows 4..7, col  Z      : b_ih + b_hh
    wx = w_ref[0:4, 0:Z]                                     # (4, Z)
    wg = w_ref[4:8, 0:Z]                                     # (4, Z)
    whh = w_ref[0:4, Z:Z + 1]                                # (4, 1)
    bias = w_ref[4:8, Z:Z + 1]                               # (4, 1)

    # SMEM scalars: [0]=h, [1]=c, [2]=softweight, [3:]=hyperprior_initialization_vars
    h0 = scal_ref[0]
    c0 = scal_ref[1]
    sw = scal_ref[2]
    init_v = scal_ref[3 + step_ref[0]]

    # Gates (PyTorch LSTM order i, f, g, o), shape (4, 1): VPU mul + one XLU lane reduce.
    prod = wx * sum_x + wg * sum_g                           # (4, Z)
    gates = jnp.sum(prod, axis=-1, keepdims=True) + bias + whh * h0   # (4, 1)

    # One sigmoid pass + one tanh pass over all four gates, slice afterwards.
    sig = jax.nn.sigmoid(gates)                              # (4, 1)
    tnh = jnp.tanh(gates)                                    # (4, 1)
    i_g = sig[0:1]
    f_g = sig[1:2]
    g_g = tnh[2:3]
    o_g = sig[3:4]

    c_new = f_g * c0 + i_g * g_g                             # (1, 1)
    h_new = o_g * jnp.tanh(c_new)                            # (1, 1)
    net = init_v + sw * h_new                                # (1, 1)

    # Single lane-dense output: lane 0 = net, lane 1 = h_new, lane 2 = c_new.
    lane = jax.lax.broadcasted_iota(jnp.int32, (1, 128), 1)
    out = jnp.where(lane == 0, net,
          jnp.where(lane == 1, h_new,
          jnp.where(lane == 2, c_new, 0.0)))
    out_ref[...] = out


def prepare_lstm_params(w_ih, w_hh, b_ih, b_hh, num_x_rows, num_g_rows):
    """Hoisted (one-time) parameter packing: (8, Z+1) weight slab with mean scales folded in."""
    four_h, two_z = w_ih.shape
    # The kernel (and the PyTorch module) assume hidden_dim == 1.
    assert four_h == 4 and w_hh.shape == (4, 1), "kernel assumes hidden_dim == 1"
    Z = two_z // 2
    wx = w_ih[:, :Z].astype(jnp.float32) / float(num_x_rows)     # fold 1/(S*B)
    wg = w_ih[:, Z:].astype(jnp.float32) / float(num_g_rows)     # fold 1/B
    whh_col = w_hh.reshape(4, 1).astype(jnp.float32)
    bias_col = (b_ih + b_hh).reshape(4, 1).astype(jnp.float32)
    top = jnp.concatenate([wx, whh_col], axis=1)                 # (4, Z+1)
    bot = jnp.concatenate([wg, bias_col], axis=1)                # (4, Z+1)
    return jnp.concatenate([top, bot], axis=0)                   # (8, Z+1)


@jax.jit
def hyperprior_combination_lstm(input_x, grad0, w_slab, init_vars, hidden,
                                step_idx, softweight):
    """Returns (net[1,1,1], (h[1,1,1], c[1,1,1])) — same as the PyTorch forward."""
    S, B, Z = input_x.shape
    x2 = input_x.reshape(S * B, Z).astype(jnp.float32)   # mean over (S,B) == mean over rows
    g2 = grad0.astype(jnp.float32)                       # (B, Z)

    h0, c0 = hidden
    scal = jnp.concatenate([
        jnp.reshape(h0, (1,)).astype(jnp.float32),
        jnp.reshape(c0, (1,)).astype(jnp.float32),
        jnp.asarray(softweight, jnp.float32).reshape(1),
        init_vars.astype(jnp.float32),
    ])                                                   # (3 + update_step,)
    step = jnp.reshape(jnp.asarray(step_idx, jnp.int32), (1,))

    vmem = pl.BlockSpec(memory_space=pltpu.MemorySpace.VMEM)
    smem = pl.BlockSpec(memory_space=pltpu.MemorySpace.SMEM)

    packed = pl.pallas_call(
        functools.partial(_hyperprior_lstm_kernel, z_dim=Z),
        out_shape=jax.ShapeDtypeStruct((1, 128), jnp.float32),
        in_specs=[vmem, vmem, vmem, smem, smem],
        out_specs=vmem,
    )(x2, g2, w_slab, scal, step)

    # Match PyTorch: lstm output / hidden have shape (1, 1, hidden_dim) = (1, 1, 1)
    net = packed[0, 0].reshape(1, 1, 1)
    h_new = packed[0, 1].reshape(1, 1, 1)
    c_new = packed[0, 2].reshape(1, 1, 1)
    return net, (h_new, c_new)


def _reference(input_x, grad0, w_ih, w_hh, b_ih, b_hh, init_vars, hidden,
               step_idx, softweight):
    """Pure-JAX reference mirroring torch.nn.LSTM single-step semantics."""
    mean_x = input_x.mean(axis=0).mean(axis=0)
    mean_g = grad0.mean(axis=0)
    net = jnp.concatenate((mean_x, mean_g), axis=0)               # (2*Z,)
    h0, c0 = hidden
    gates = w_ih @ net + b_ih + (w_hh @ h0.reshape(1)) + b_hh     # (4,)
    i_g = jax.nn.sigmoid(gates[0])
    f_g = jax.nn.sigmoid(gates[1])
    g_g = jnp.tanh(gates[2])
    o_g = jax.nn.sigmoid(gates[3])
    c_new = f_g * c0.reshape(()) + i_g * g_g
    h_new = o_g * jnp.tanh(c_new)
    out = init_vars[step_idx] + softweight * h_new
    return out.reshape(1, 1, 1), (h_new.reshape(1, 1, 1), c_new.reshape(1, 1, 1))


if __name__ == "__main__":
    # Small, deterministic setup consistent with the module's __init__ / forward.
    S, B, Z = 8, 4, 32            # input_x: (S, B, z_dim); grad[0]: (B, z_dim)
    update_step = 5
    step_idx = 2
    softweight = 0.01             # args.hyperprior_combination_softweight
    hidden_dim = 1

    key = jax.random.PRNGKey(0)
    kx, kg, k1, k2, k3, k4 = jax.random.split(key, 6)

    input_x = jax.random.normal(kx, (S, B, Z), dtype=jnp.float32)
    grad0 = jax.random.normal(kg, (B, Z), dtype=jnp.float32)

    # nn.LSTM(z_dim*2, 1) parameters, uniform(-1/sqrt(hidden), 1/sqrt(hidden)) = U(-1, 1)
    w_ih = jax.random.uniform(k1, (4 * hidden_dim, 2 * Z), minval=-1.0, maxval=1.0)
    w_hh = jax.random.uniform(k2, (4 * hidden_dim, hidden_dim), minval=-1.0, maxval=1.0)
    b_ih = jax.random.uniform(k3, (4 * hidden_dim,), minval=-1.0, maxval=1.0)
    b_hh = jax.random.uniform(k4, (4 * hidden_dim,), minval=-1.0, maxval=1.0)

    # hyperprior_init_mode == 'LP': [0, 0, ..., 0, 1]
    init_vars = jnp.zeros((update_step,), jnp.float32).at[update_step - 1].set(1.0)

    # init_hidden(): zeros (1, 1, hidden_dim)
    hidden = (jnp.zeros((1, 1, hidden_dim), jnp.float32),
              jnp.zeros((1, 1, hidden_dim), jnp.float32))

    # One-time (hoisted) parameter packing: mean scales folded into the weights.
    w_slab = prepare_lstm_params(w_ih, w_hh, b_ih, b_hh,
                                 num_x_rows=S * B, num_g_rows=B)

    net, new_hidden = hyperprior_combination_lstm(
        input_x, grad0, w_slab, init_vars, hidden, step_idx, softweight)
    jax.block_until_ready(net)
    jax.block_until_ready(new_hidden)

    ref_net, ref_hidden = _reference(input_x, grad0, w_ih, w_hh, b_ih, b_hh,
                                     init_vars, hidden, step_idx, softweight)
    assert jnp.allclose(net, ref_net, atol=1e-5, rtol=1e-5)
    assert jnp.allclose(new_hidden[0], ref_hidden[0], atol=1e-5, rtol=1e-5)
    assert jnp.allclose(new_hidden[1], ref_hidden[1], atol=1e-5, rtol=1e-5)

    print("KERNEL_OK")
</pallas_src>

<mosaic_0001>
module attributes {stable_mosaic.version = 11 : i64} {
  func.func @_hyperprior_lstm_kernel(%arg0: memref<32x32xf32, #tpu.memory_space<vmem>>, %arg1: memref<4x32xf32, #tpu.memory_space<vmem>>, %arg2: memref<8x33xf32, #tpu.memory_space<vmem>>, %arg3: memref<8xf32, #tpu.memory_space<smem>>, %arg4: memref<1xi32, #tpu.memory_space<smem>>, %arg5: memref<1x128xf32, #tpu.memory_space<vmem>>) attributes {dimension_semantics = [], scalar_prefetch = 0 : i64, scratch_operands = 0 : i64, tpu.core_type = #tpu.core_type<tc>} {
    %c0 = arith.constant 0 : index
    %c0_0 = arith.constant 0 : index
    %0 = vector.load %arg0[%c0, %c0_0] : memref<32x32xf32, #tpu.memory_space<vmem>>, vector<32x32xf32>
    %cst = arith.constant dense<0.000000e+00> : vector<32xf32>
    %1 = vector.multi_reduction <add>, %0, %cst [0] : vector<32x32xf32> to vector<32xf32>
    %2 = vector.shape_cast %1 : vector<32xf32> to vector<1x32xf32>
    %c0_1 = arith.constant 0 : index
    %c0_2 = arith.constant 0 : index
    %3 = vector.load %arg1[%c0_1, %c0_2] : memref<4x32xf32, #tpu.memory_space<vmem>>, vector<4x32xf32>
    %cst_3 = arith.constant dense<0.000000e+00> : vector<32xf32>
    %4 = vector.multi_reduction <add>, %3, %cst_3 [0] : vector<4x32xf32> to vector<32xf32>
    %5 = vector.shape_cast %4 : vector<32xf32> to vector<1x32xf32>
    %c0_4 = arith.constant 0 : index
    %c0_5 = arith.constant 0 : index
    %6 = vector.load %arg2[%c0_4, %c0_5] : memref<8x33xf32, #tpu.memory_space<vmem>>, vector<4x32xf32>
    %c4 = arith.constant 4 : index
    %c0_6 = arith.constant 0 : index
    %7 = vector.load %arg2[%c4, %c0_6] : memref<8x33xf32, #tpu.memory_space<vmem>>, vector<4x32xf32>
    %c0_7 = arith.constant 0 : index
    %c32 = arith.constant 32 : index
    %8 = vector.load %arg2[%c0_7, %c32] : memref<8x33xf32, #tpu.memory_space<vmem>>, vector<4x1xf32>
    %c4_8 = arith.constant 4 : index
    %c32_9 = arith.constant 32 : index
    %9 = vector.load %arg2[%c4_8, %c32_9] : memref<8x33xf32, #tpu.memory_space<vmem>>, vector<4x1xf32>
    %c0_10 = arith.constant 0 : index
    %10 = memref.load %arg3[%c0_10] : memref<8xf32, #tpu.memory_space<smem>>
    %c1 = arith.constant 1 : index
    %11 = memref.load %arg3[%c1] : memref<8xf32, #tpu.memory_space<smem>>
    %c2 = arith.constant 2 : index
    %12 = memref.load %arg3[%c2] : memref<8xf32, #tpu.memory_space<smem>>
    %c0_11 = arith.constant 0 : index
    %13 = memref.load %arg4[%c0_11] : memref<1xi32, #tpu.memory_space<smem>>
    %c3_i32 = arith.constant 3 : i32
    %14 = arith.addi %c3_i32, %13 : i32
    %15 = arith.index_cast %14 : i32 to index
    %16 = memref.load %arg3[%15] : memref<8xf32, #tpu.memory_space<smem>>
    %17 = vector.broadcast %2 : vector<1x32xf32> to vector<4x32xf32>
    %18 = arith.mulf %6, %17 : vector<4x32xf32>
    %19 = vector.broadcast %5 : vector<1x32xf32> to vector<4x32xf32>
    %20 = arith.mulf %7, %19 : vector<4x32xf32>
    %21 = arith.addf %18, %20 : vector<4x32xf32>
    %cst_12 = arith.constant dense<0.000000e+00> : vector<4xf32>
    %22 = vector.multi_reduction <add>, %21, %cst_12 [1] : vector<4x32xf32> to vector<4xf32>
    %23 = vector.shape_cast %22 : vector<4xf32> to vector<4x1xf32>
    %24 = arith.addf %23, %9 : vector<4x1xf32>
    %25 = vector.broadcast %10 : f32 to vector<4x1xf32>
    %26 = arith.mulf %8, %25 : vector<4x1xf32>
    %27 = arith.addf %24, %26 : vector<4x1xf32>
    %28 = arith.negf %27 : vector<4x1xf32>
    %29 = math.exp %28 : vector<4x1xf32>
    %cst_13 = arith.constant 1.000000e+00 : f32
    %30 = vector.broadcast %cst_13 : f32 to vector<4x1xf32>
    %31 = arith.addf %30, %29 : vector<4x1xf32>
    %32 = arith.divf %30, %31 : vector<4x1xf32>
    %33 = math.tanh %27 : vector<4x1xf32>
    %34 = vector.extract_strided_slice %32 {offsets = [0, 0], sizes = [1, 1], strides = [1, 1]} : vector<4x1xf32> to vector<1x1xf32>
    %35 = vector.extract_strided_slice %32 {offsets = [1, 0], sizes = [1, 1], strides = [1, 1]} : vector<4x1xf32> to vector<1x1xf32>
    %36 = vector.extract_strided_slice %33 {offsets = [2, 0], sizes = [1, 1], strides = [1, 1]} : vector<4x1xf32> to vector<1x1xf32>
    %37 = vector.extract_strided_slice %32 {offsets = [3, 0], sizes = [1, 1], strides = [1, 1]} : vector<4x1xf32> to vector<1x1xf32>
    %38 = vector.broadcast %11 : f32 to vector<1x1xf32>
    %39 = arith.mulf %35, %38 : vector<1x1xf32>
    %40 = arith.mulf %34, %36 : vector<1x1xf32>
    %41 = arith.addf %39, %40 : vector<1x1xf32>
    %42 = math.tanh %41 : vector<1x1xf32>
    %43 = arith.mulf %37, %42 : vector<1x1xf32>
    %44 = vector.broadcast %12 : f32 to vector<1x1xf32>
    %45 = arith.mulf %44, %43 : vector<1x1xf32>
    %46 = vector.broadcast %16 : f32 to vector<1x1xf32>
    %47 = arith.addf %46, %45 : vector<1x1xf32>
    %48 = tpu.iota {dimensions = array<i32: 1>} : vector<1x128xi32>
    %c0_i32 = arith.constant 0 : i32
    %49 = vector.broadcast %c0_i32 : i32 to vector<1x128xi32>
    %50 = arith.cmpi eq, %48, %49 : vector<1x128xi32>
    %c1_i32 = arith.constant 1 : i32
    %51 = vector.broadcast %c1_i32 : i32 to vector<1x128xi32>
    %52 = arith.cmpi eq, %48, %51 : vector<1x128xi32>
    %c2_i32 = arith.constant 2 : i32
    %53 = vector.broadcast %c2_i32 : i32 to vector<1x128xi32>
    %54 = arith.cmpi eq, %48, %53 : vector<1x128xi32>
    %cst_14 = arith.constant 0.000000e+00 : f32
    %55 = vector.shape_cast %41 : vector<1x1xf32> to vector<1x1xf32>
    %56 = vector.broadcast %55 : vector<1x1xf32> to vector<1x128xf32>
    %57 = vector.broadcast %cst_14 : f32 to vector<1x128xf32>
    %58 = arith.select %54, %56, %57 : vector<1x128xi1>, vector<1x128xf32>
    %59 = vector.shape_cast %43 : vector<1x1xf32> to vector<1x1xf32>
    %60 = vector.broadcast %59 : vector<1x1xf32> to vector<1x128xf32>
    %61 = arith.select %52, %60, %58 : vector<1x128xi1>, vector<1x128xf32>
    %62 = vector.shape_cast %47 : vector<1x1xf32> to vector<1x1xf32>
    %63 = vector.broadcast %62 : vector<1x1xf32> to vector<1x128xf32>
    %64 = arith.select %50, %63, %61 : vector<1x128xi1>, vector<1x128xf32>
    %c0_15 = arith.constant 0 : index
    %c0_16 = arith.constant 0 : index
    %65 = vector.load %arg5[%c0_15, %c0_16] : memref<1x128xf32, #tpu.memory_space<vmem>>, vector<1x128xf32>
    tpu.vector_store %arg5[%c0_15, %c0_16], %64 {strides = array<i32>} : memref<1x128xf32, #tpu.memory_space<vmem>>, vector<1x128xf32>,
    return
  }
}

</mosaic_0001>

<llo_original>
// kernel: hyperprior_combination_lstm.1
$region0: #{hyperprior_combination_lstm.1}
  #allocation0 [shape = 'u32[]', space=smem, size = 0x4, offset = 0x4, fixed_abs, tag = 'smem constant byte address 0x4 - core index']
  #allocation1 [shape = 'u32[144,128]{1,0:T(1,128)}', space=vmem, size = 0x12000, scoped, tag = 'internal scratch']
  #allocation2 [shape = 's32[1]{0:T(128)S(6)}', space=smem, size = 0x200, scoped, tag = 'scoped memory for hyperprior_combination_lstm.1']
  %s0 = inlined_call_operand.hbm [shape: f32[32,32], index: 0, kind: input, shape index: {}]
  %s1 = inlined_call_operand.vmem [shape: f32[4,32], index: 1, kind: input, shape index: {}]
  %s2 = inlined_call_operand.vmem [shape: f32[8,33], index: 2, kind: input, shape index: {}]
  %s3 = inlined_call_operand.vmem [shape: f32[8], index: 3, kind: input, shape index: {}]
  %s4 = inlined_call_operand.<no memory space> [shape: s32[1], index: 4, kind: input, shape index: {}]
  %s5 = inlined_call_operand.vmem [shape: f32[1,128], index: 5, kind: output, shape index: {}]
  %s6 = sld [smem:[#allocation0]]
  $region38: #{hyperprior_combination_lstm.1} parent=0
    _
  %s8 = ssub.s32 1, %s6
  %s9 = scalar_select 0, %s8, %s6
  %10 = sst [smem:[#allocation2]] %s4
  $region1: #{hyperprior_combination_lstm.1} parent=0
    #allocation3 [shape = 'u8[16384]{0}', space=vmem, size = 0x4000, scoped, tag = 'input window, operand 0, single buffered']
    #allocation4 [shape = 's32[1]{0}', space=sflag, size = 0x4, scoped, tag = 'scoped memory for hyperprior_combination_lstm.1']
    #allocation5 [shape = 's32[1]{0}', space=sflag, size = 0x4, scoped, tag = 'scoped memory for hyperprior_combination_lstm.1']
    #allocation6 [shape = 'u8[512]{0}', space=smem, size = 0x200, scoped, tag = 'input window, operand 3, single buffered']
    %11 = vsyncpa [#allocation4], 0
    %12 = vsyncpa [#allocation5], 0
    // Predicated region
    $region2: #{hyperprior_combination_lstm.1} parent=1 // pred_check
      _
    $region3: #{hyperprior_combination_lstm.1} parent=1 // pred_check_branch
      %14 = sbr.rel (0) target = $region5
    $region4: #{hyperprior_combination_lstm.1} parent=1 // pred_region
      %s16 = ssub.s32 512, 512
      %17 = vsyncadd [#allocation4], %s16
      %s18 = sshll.u32 [#allocation3], 4
      %s19 = int_to_ptr.vmem [resolvable:$true] %s18
      %24 = dma.hbm_to_vmem [thread:$0]  %s0, 512, %s19, [#allocation4], 128, 128, 8
    $region5: #{hyperprior_combination_lstm.1} parent=1 // pred_fallthru
      _
    // Predicated region
    $region6: #{hyperprior_combination_lstm.1} parent=1 // pred_check
      _
    $region7: #{hyperprior_combination_lstm.1} parent=1 // pred_check_branch
      %26 = sbr.rel (0) target = $region9
    $region8: #{hyperprior_combination_lstm.1} parent=1 // pred_region
      _
    $region9: #{hyperprior_combination_lstm.1} parent=1 // pred_fallthru
      _
    // Predicated region
    $region10: #{hyperprior_combination_lstm.1} parent=1 // pred_check
      _
    $region11: #{hyperprior_combination_lstm.1} parent=1 // pred_check_branch
      %28 = sbr.rel (0) target = $region13
    $region12: #{hyperprior_combination_lstm.1} parent=1 // pred_region
      _
    $region13: #{hyperprior_combination_lstm.1} parent=1 // pred_fallthru
      _
    // Predicated region
    $region14: #{hyperprior_combination_lstm.1} parent=1 // pred_check
      _
    $region15: #{hyperprior_combination_lstm.1} parent=1 // pred_check_branch
      %30 = sbr.rel (0) target = $region17
    $region16: #{hyperprior_combination_lstm.1} parent=1 // pred_region
      %s32 = ssub.s32 16, 16
      %33 = vsyncadd [#allocation5], %s32
      %s35 = sshll.u32 %s3, 4
      %s36 = int_to_ptr.vmem [resolvable:$true] %s35
      %38 = dma.vmem_to_smem %s36, 16, [#allocation6], [#allocation5]
    $region17: #{hyperprior_combination_lstm.1} parent=1 // pred_fallthru
      _
    // Predicated region
    $region18: #{hyperprior_combination_lstm.1} parent=1 // pred_check
      _
    $region19: #{hyperprior_combination_lstm.1} parent=1 // pred_check_branch
      %40 = sbr.rel (0) target = $region21
    $region20: #{hyperprior_combination_lstm.1} parent=1 // pred_region
      _
    $region21: #{hyperprior_combination_lstm.1} parent=1 // pred_fallthru
      _
    // Predicated region
    $region22: #{hyperprior_combination_lstm.1} parent=1 // pred_check
      _
    $region23: #{hyperprior_combination_lstm.1} parent=1 // pred_check_branch
      %42 = sbr.rel (0) target = $region25
    $region24: #{hyperprior_combination_lstm.1} parent=1 // pred_region
      %43 = dma.done [#allocation4], 512
    $region25: #{hyperprior_combination_lstm.1} parent=1 // pred_fallthru
      _
    // Predicated region
    $region26: #{hyperprior_combination_lstm.1} parent=1 // pred_check
      _
    $region27: #{hyperprior_combination_lstm.1} parent=1 // pred_check_branch
      %45 = sbr.rel (0) target = $region29
    $region28: #{hyperprior_combination_lstm.1} parent=1 // pred_region
      %46 = dma.done [#allocation5], 16
    $region29: #{hyperprior_combination_lstm.1} parent=1 // pred_fallthru
      _
    %47 = sfence
    %v48 = vld [vmem:[#allocation3] sm:$0xff]
    %v49 = vld [vmem:[#allocation3 + $0x8] sm:$0xff]
    %v50 = vld [vmem:[#allocation3 + $0x10] sm:$0xff]
    %v51 = vld [vmem:[#allocation3 + $0x18] sm:$0xff]
    %vm52 = vcmask 261120
    %v53 = vsel %vm52, %v48, 0.0
    %v54 = vsel %vm52, %v49, 0.0
    %v55 = vadd.f32 %v53, %v54
    %v56 = vsel %vm52, %v50, 0.0
    %v57 = vadd.f32 %v55, %v56
    %v58 = vsel %vm52, %v51, 0.0
    %v59 = vadd.f32 %v57, %v58
    %v60 = vrot.slane %v59, 4
    %v61 = vadd.f32 %v59, %v60
    %v62 = vrot.slane %v61, 2
    %v63 = vadd.f32 %v61, %v62
    %v64 = vrot.slane %v63, 1
    %v65 = vadd.f32 %v63, %v64
    %v66 = vld [vmem:[%s1] sm:$0xf]
    %vm67 = vcmask 257024
    %v68 = vsel %vm67, %v66, 0.0
    %v69 = vrot.slane %v68, 4
    %v70 = vadd.f32 %v68, %v69
    %v71 = vrot.slane %v70, 2
    %v72 = vadd.f32 %v70, %v71
    %v73 = vrot.slane %v72, 1
    %v74 = vadd.f32 %v72, %v73
    %v75 = vld [vmem:[%s2] sm:$0xf]
    %v76 = vld [vmem:[%s2 + $0x4] sm:$0xf]
    %s77 = sld [smem:[#allocation6]]
    %s78 = sld [smem:[#allocation6 + $0x1]]
    %s79 = sld [smem:[#allocation6 + $0x2]]
    %s80 = sld [smem:[#allocation2]]
    %s81 = sadd.s32 %s80, 3
    %s82 = sld [smem:[#allocation6 + %s81]]
    %v83 = vmul.f32 %v75, %v65
    %v84 = vmul.f32 %v76, %v74
    %v85 = vadd.f32 %v83, %v84
    %v86 = vsel %vm67, %v85, 0.0
    %87 = vadd.xlane.f32.xlu0 %v86
    %v88 = vpop.xlane.xlu0 %87
    %v89 = vadd.f32 %v88, %v76
    %v90 = vstv %s77
    %v91 = vmul.f32 %v75, %v90
    %v92 = vadd.f32 %v89, %v91
    %v93 = vxor.u32 %v92, 2147483648
    %v94 = vmul.f32 %v93, 1.442695
    %v95 = vpow.pop %v94
    %v96 = vadd.f32 %v95, 1.0
    %v97 = vrcp.pop %v96
    %v98 = vmul.f32 1.0, %v97
    %v99 = vtanh.pop %v92
    %v100 = vstv %s78
    %v101 = vmul.f32 %v98, %v100
    %v103 = vrot.slane %v99, 2
    %v105 = vmul.f32 %v98, %v103
    %v107 = vrot.slane %v105, 7
    %v109 = vadd.f32 %v101, %v107
    %v110 = vtanh.pop %v109
    %v112 = vrot.slane %v110, 6
    %v114 = vmul.f32 %v98, %v112
    %v115 = vstv %s79
    %v116 = vmul.f32 %v115, %v114
    %v117 = vstv %s82
    %v118 = vadd.f32 %v117, %v116
    %v119 = vlaneseq
    %v120 = vand.u32 %v119, 127
    %vm121 = vcmp.eq.s32.totalorder %v120, 0
    %vm122 = vcmp.eq.s32.totalorder %v120, 1
    %vm123 = vcmp.eq.s32.totalorder %v120, 2
    %125 = vset.pattern.permute.xlu0 32
    %126 = vperm.xlu0 %125, %v109
    %v127 = vpop.permute.xlu0 %126
    %v129 = vsel %vm123, %v127, 0.0
    %131 = vset.pattern.permute.xlu0 32
    %132 = vperm.xlu0 %131, %v114
    %v133 = vpop.permute.xlu0 %132
    %v136 = vrot.slane %v129, 6
    %v138 = vsel %vm122, %v133, %v136
    %140 = vset.pattern.permute.xlu0 32
    %141 = vperm.xlu0 %140, %v118
    %v142 = vpop.permute.xlu0 %141
    %v144 = vsel %vm121, %v142, %v138
    %145 = vst [vmem:[%s5 - $0x3] sm:$0x8] %v144
    // Predicated region
    $region30: #{hyperprior_combination_lstm.1} parent=1 // pred_check
      _
    $region31: #{hyperprior_combination_lstm.1} parent=1 // pred_check_branch
      %147 = sbr.rel (0) target = $region33
    $region32: #{hyperprior_combination_lstm.1} parent=1 // pred_region
      _
    $region33: #{hyperprior_combination_lstm.1} parent=1 // pred_fallthru
      _
    // Predicated region
    $region34: #{hyperprior_combination_lstm.1} parent=1 // pred_check
      _
    $region35: #{hyperprior_combination_lstm.1} parent=1 // pred_check_branch
      %149 = sbr.rel (0) target = $region37
    $region36: #{hyperprior_combination_lstm.1} parent=1 // pred_region
      _
    $region37: #{hyperprior_combination_lstm.1} parent=1 // pred_fallthru
      _
    %150 = vsyncpa [#allocation4], 1
    %151 = vsyncpa [#allocation5], 1

</llo_original>
